<compile_context>
chip_gen: v7x
topology: tpu7x:2x2x1
jax: 0.10.0
libtpu: 0.0.40
codegen_flags: <defaults>
</compile_context>

<pallas_src>
import jax
import jax.numpy as jnp
from jax.experimental import pallas as pl
from jax.experimental.pallas import tpu as pltpu


_VMEM_LIMIT_BYTES = 48 * 1024 * 1024      # < 64 MiB physical on v7x; ample on v5e/v6e
_STREAM_BUDGET_BYTES = 24 * 1024 * 1024   # double-buffered gi + h_seq blocks


def _mxu(x):
    """Cast an MXU operand to bf16 (accumulation stays f32)."""
    return x.astype(jnp.bfloat16)


def _sigmoid(x):
    # One EUP push (tanh) instead of two (exp + reciprocal).
    return 0.5 * jnp.tanh(0.5 * x) + 0.5


def _num_tensorcores():
    """2 only for v7x-class chips (two TensorCores visible to one kernel)."""
    try:
        kind = jax.devices()[0].device_kind.lower()
    except Exception:
        return 1
    return 2 if "v7" in kind else 1


def _pick_batch_tile(B):
    """bt is the M dim of the serial (bt,H)@(H,3H) matmul: keep it as large as
    possible.  Split only across real TensorCores (v7x) and only when each
    half keeps the MXU reasonably full (>=128 rows, sublane aligned)."""
    if _num_tensorcores() > 1 and B % 2 == 0:
        half = B // 2
        if half >= 128 and half % 8 == 0:
            return half, True
    return B, False


def _pick_time_chunk(T, bt, H, itemsize):
    """Largest divisor of T whose double-buffered (gi + out) blocks fit the
    streaming VMEM budget.  Keeps VMEM independent of T at production sizes."""
    per_t = 2 * bt * 4 * H * itemsize      # 2 buffers x (3H gi + H out) per step
    cap = max(1, _STREAM_BUDGET_BYTES // max(per_t, 1))
    tc = 1
    for d in range(1, T + 1):
        if T % d == 0 and d <= cap:
            tc = d
    return tc


# --------------------------------------------------------------------------
# Pallas kernel: GRU time recurrence for one (batch tile, time chunk)
# --------------------------------------------------------------------------
def _gru_seq_kernel(gi_ref, whh_ref, bhn_ref, out_ref, h_ref):
    """gi_ref : (Tc, bt, 3H) io_dtype  x @ W_ih + b_ih (+ b_hr,b_hz folded), [r|z|n]
       whh_ref: (H, 3H)      bf16      hidden-to-hidden weights (gates fused)
       bhn_ref: (1, H)       f32       b_hn only (stays inside r * (.))
       out_ref: (Tc, bt, H)  io_dtype  hidden-state sequence for this chunk
       h_ref  : (bt, H)      f32       hidden-state carry across time chunks
    """
    Tc = gi_ref.shape[0]
    H = whh_ref.shape[0]

    @pl.when(pl.program_id(1) == 0)            # first time chunk: h0 = zeros
    def _():
        h_ref[...] = jnp.zeros_like(h_ref)

    whh = whh_ref[...]                          # hoisted out of the serial loop
    bhn = bhn_ref[...]

    def step(t, h):
        gi = gi_ref[t].astype(jnp.float32)                        # (bt, 3H)
        gh = jnp.dot(h.astype(jnp.bfloat16), whh,
                     preferred_element_type=jnp.float32)          # (bt, 3H)
        r = _sigmoid(gi[:, :H] + gh[:, :H])
        z = _sigmoid(gi[:, H:2 * H] + gh[:, H:2 * H])
        # PyTorch GRU: b_hn stays inside r * (W_hn h + b_hn)
        n = jnp.tanh(gi[:, 2 * H:] + r * (gh[:, 2 * H:] + bhn))
        h_new = (1.0 - z) * n + z * h
        out_ref[t] = h_new.astype(out_ref.dtype)
        return h_new

    # TODO(synk): on v6e/v7x the gate math could run in bf16 (v5e has no bf16
    # VPU/EUP); kept f32 here so one code path is exact on every generation.
    h_ref[...] = jax.lax.fori_loop(0, Tc, step, h_ref[...],
                                   unroll=(Tc if Tc <= 8 else 4))


def gru_recurrence(gates_tm, whh, bhn, *, out_dtype):
    """gates_tm: (T, B, 3H), whh: (H, 3H), bhn: (1, H) -> h_seq (T, B, H)."""
    T, B, G = gates_tm.shape
    H = whh.shape[0]
    bt, split_across_cores = _pick_batch_tile(B)
    tc = _pick_time_chunk(T, bt, H, jnp.dtype(gates_tm.dtype).itemsize)
    nb, nt = B // bt, T // tc

    if split_across_cores and nb > 1:
        # v7x: shard the independent batch tiles across the two TensorCores.
        dim_sem = (pltpu.CORE_PARALLEL, pltpu.ARBITRARY)
    else:
        dim_sem = ("parallel", "arbitrary")

    return pl.pallas_call(
        _gru_seq_kernel,
        out_shape=jax.ShapeDtypeStruct((T, B, H), out_dtype),
        grid_spec=pltpu.PrefetchScalarGridSpec(
            num_scalar_prefetch=0,
            grid=(nb, nt),
            in_specs=[
                pl.BlockSpec((tc, bt, G), lambda b, t: (t, b, 0)),
                # constant-index weights / bias: single-buffered, no re-DMA
                pl.BlockSpec((H, G), lambda b, t: (0, 0),
                             pipeline_mode=pl.Buffered(1)),
                pl.BlockSpec((1, H), lambda b, t: (0, 0),
                             pipeline_mode=pl.Buffered(1)),
            ],
            out_specs=pl.BlockSpec((tc, bt, H), lambda b, t: (t, b, 0)),
            scratch_shapes=[pltpu.VMEM((bt, H), jnp.float32)],
        ),
        compiler_params=pltpu.CompilerParams(
            dimension_semantics=dim_sem,
            vmem_limit_bytes=_VMEM_LIMIT_BYTES),
    )(gates_tm, _mxu(whh), bhn.astype(jnp.float32))


# --------------------------------------------------------------------------
# Parameters (deterministic, synthetic) — fused-gate layout [r|z|n]
# --------------------------------------------------------------------------
def init_params(key, num_q, num_s, hidden_dim, layer_dim):
    H = hidden_dim
    keys = iter(jax.random.split(key, 4 + 4 * layer_dim))
    scale = 1.0 / float(H) ** 0.5
    params = {
        "hidden_dim": H,
        "layer_dim": layer_dim,
        "emb_q": jax.random.normal(next(keys), (num_q + 1, H), jnp.float32),
        "emb_s": jax.random.normal(next(keys), (num_s + 1, H), jnp.float32),
        # fc1 = Linear(3*hidden_dim, 1)  (768 = 3*256 in the original module)
        "fc1_w": jax.random.uniform(next(keys), (3 * H, 1), jnp.float32, -scale, scale),
        "fc1_b": jax.random.uniform(next(keys), (1, 1), jnp.float32, -scale, scale),
        "wih": [], "whh": [], "bih": [], "bhh": [],
    }
    for l in range(layer_dim):
        in_dim = 4 * H if l == 0 else H
        params["wih"].append(
            jax.random.uniform(next(keys), (in_dim, 3 * H), jnp.float32, -scale, scale))
        params["whh"].append(
            jax.random.uniform(next(keys), (H, 3 * H), jnp.float32, -scale, scale))
        params["bih"].append(
            jax.random.uniform(next(keys), (1, 3 * H), jnp.float32, -scale, scale))
        params["bhh"].append(
            jax.random.uniform(next(keys), (1, 3 * H), jnp.float32, -scale, scale))
    return params


# --------------------------------------------------------------------------
# Forward pass (Pallas GRU kernel + XLA glue for gathers / hoisted GEMMs)
# --------------------------------------------------------------------------
def dkt_forward(params, x_53, io_dtype=jnp.bfloat16):
    """Pallas-backed DKT forward.  x_53: (B, T, F) float32, F >= 3 -> (B, T-1, 1).

    io_dtype is the storage dtype of the precomputed gates and of the
    recurrence output (the two largest HBM streams); gate math inside the
    kernel is always f32.
    """
    H = params["hidden_dim"]
    B, T, _ = x_53.shape

    # Only the tiny index/answer arrays are transposed; activations are built
    # time-major directly (no HBM transpose pass over (T,B,·H) tensors).
    ques_tm = jnp.transpose(x_53[:, :, 0]).astype(jnp.int32)              # (T, B)
    skill_tm = jnp.transpose(x_53[:, :, 1]).astype(jnp.int32)             # (T, B)
    ans_tm = jnp.transpose(x_53[:, :, 2]).astype(jnp.float32)[..., None]  # (T, B, 1)
    # x_co = x_53[:, :, 3:]  # unused in the reference forward

    # Embedding gather: table lookup, plain-JAX glue.
    ini_q = jnp.take(params["emb_q"], ques_tm, axis=0)                    # (T, B, H)
    ini_s = jnp.take(params["emb_s"], skill_tm, axis=0)                   # (T, B, H)
    x2_tm = jnp.concatenate([ini_q, ini_s], axis=-1)                      # (T, B, 2H)

    # Layer-0 input projection hoisted out of the recurrence as ONE GEMM; the
    # ans-blend is pre-scaled into the bf16 GEMM operand (fuses into the
    # einsum epilogue instead of two (T,B,3H) f32 intermediates in HBM).
    x4 = _mxu(jnp.concatenate([x2_tm * ans_tm, x2_tm * (1.0 - ans_tm)], axis=-1))
    bih, bhh = params["bih"][0], params["bhh"][0]
    bih_folded = bih.at[:, :2 * H].add(bhh[:, :2 * H])     # fold b_hr, b_hz
    gates = jnp.einsum("tbi,ij->tbj", x4, _mxu(params["wih"][0]),
                       preferred_element_type=jnp.float32) + bih_folded
    h_seq = gru_recurrence(gates.astype(io_dtype), params["whh"][0],
                           bhh[:, 2 * H:], out_dtype=io_dtype)            # (T, B, H)

    for l in range(1, params["layer_dim"]):
        bih, bhh = params["bih"][l], params["bhh"][l]
        bih_folded = bih.at[:, :2 * H].add(bhh[:, :2 * H])
        gates = jnp.einsum("tbi,ij->tbj", _mxu(h_seq), _mxu(params["wih"][l]),
                           preferred_element_type=jnp.float32) + bih_folded
        h_seq = gru_recurrence(gates.astype(io_dtype), params["whh"][l],
                               bhh[:, 2 * H:], out_dtype=io_dtype)

    # logit = fc1(cat([out[:, :T-1], x2[:, 1:]], -1)), concat eliminated:
    #         out @ w_top + e @ w_bot + b.  Tiny Dout=1 GEMV left to XLA
    #         (a Dout=1 Pallas store would be a masked, lane-sparse vst).
    w_out = params["fc1_w"][:H]                                           # (H, 1)
    w_e = params["fc1_w"][H:]                                             # (2H, 1)
    out_part = jnp.einsum("tbh,ho->tbo", h_seq[:T - 1].astype(jnp.float32), w_out)
    e_part = jnp.einsum("tbh,ho->tbo", x2_tm[1:], w_e)                    # (T-1, B, 1)
    logit = jnp.transpose(out_part + e_part, (1, 0, 2)) + params["fc1_b"]
    return logit                                                          # (B, T-1, 1)


# --------------------------------------------------------------------------
# Pure-JAX reference (mirrors the PyTorch forward; same bf16 MXU casting so
# the comparison isolates kernel/recurrence correctness)
# --------------------------------------------------------------------------
def dkt_forward_ref(params, x_53):
    H = params["hidden_dim"]
    B, T, _ = x_53.shape
    ques = x_53[:, :, 0].astype(jnp.int32)
    skill = x_53[:, :, 1].astype(jnp.int32)
    ans = x_53[:, :, 2:3].astype(jnp.float32)
    ini_q = jnp.take(params["emb_q"], ques, axis=0)
    ini_s = jnp.take(params["emb_s"], skill, axis=0)
    x_2 = jnp.concatenate([ini_q, ini_s], axis=-1)                  # (B, T, 2H)
    x = jnp.concatenate([x_2 * ans, x_2 * (1.0 - ans)], axis=-1)    # (B, T, 4H)
    h = jnp.transpose(x, (1, 0, 2))                                 # (T, B, 4H)

    for l in range(params["layer_dim"]):
        wih, whh = params["wih"][l], params["whh"][l]
        bih, bhh = params["bih"][l], params["bhh"][l]

        def step(hprev, xt):
            gi = jnp.dot(_mxu(xt), _mxu(wih), preferred_element_type=jnp.float32) + bih
            gh = jnp.dot(_mxu(hprev), _mxu(whh), preferred_element_type=jnp.float32) + bhh
            r = jax.nn.sigmoid(gi[:, :H] + gh[:, :H])
            z = jax.nn.sigmoid(gi[:, H:2 * H] + gh[:, H:2 * H])
            n = jnp.tanh(gi[:, 2 * H:] + r * gh[:, 2 * H:])
            hn = (1.0 - z) * n + z * hprev
            return hn, hn

        h0 = jnp.zeros((B, H), jnp.float32)
        _, h = jax.lax.scan(step, h0, h)

    out = jnp.transpose(h, (1, 0, 2))                               # (B, T, H)
    e = x_2[:, 1:]
    feat = jnp.concatenate([out[:, :T - 1], e], axis=-1)
    logit = feat.reshape(B * (T - 1), 3 * H) @ params["fc1_w"] + params["fc1_b"]
    return logit.reshape(B, T - 1, 1)


# --------------------------------------------------------------------------
if __name__ == "__main__":
    NUM_Q, NUM_S = 50, 20       # C.NUM_Q, C.NUM_S (small synthetic values)
    HIDDEN, LAYERS = 32, 2      # hidden_dim, layer_dim (production: keep H % 128 == 0)
    B, T, F = 2, 8, 5           # batch, seq (C.MAX_STEP == T), feature cols

    key = jax.random.PRNGKey(0)
    kp, kq, ks, ka, kc = jax.random.split(key, 5)

    params = init_params(kp, NUM_Q, NUM_S, HIDDEN, LAYERS)

    ques = jax.random.randint(kq, (B, T), 0, NUM_Q + 1)
    skill = jax.random.randint(ks, (B, T), 0, NUM_S + 1)
    ans = jax.random.randint(ka, (B, T), 0, 2)
    x_co = jax.random.uniform(kc, (B, T, F - 3), jnp.float32)
    x_53 = jnp.concatenate(
        [ques[..., None].astype(jnp.float32),
         skill[..., None].astype(jnp.float32),
         ans[..., None].astype(jnp.float32),
         x_co], axis=-1)                     # (B, T, F)

    ref = dkt_forward_ref(params, x_53)

    # f32 gate/output storage: tight check against the f32 reference.
    logit_f32 = jax.block_until_ready(dkt_forward(params, x_53, io_dtype=jnp.float32))
    assert logit_f32.shape == (B, T - 1, 1), logit_f32.shape
    err32 = float(jnp.max(jnp.abs(logit_f32 - ref)))
    assert jnp.allclose(logit_f32, ref, atol=2e-3, rtol=2e-3), err32

    # bf16 gate/output storage (production default: halves the two largest
    # HBM streams and the VMEM blocks): slightly looser tolerance.
    logit_bf16 = jax.block_until_ready(dkt_forward(params, x_53))
    errbf = float(jnp.max(jnp.abs(logit_bf16 - ref)))
    assert jnp.allclose(logit_bf16, ref, atol=5e-2, rtol=5e-2), errbf

    print("KERNEL_OK")
</pallas_src>

<mosaic_0001>
module attributes {stable_mosaic.version = 11 : i64} {
  func.func @_gru_seq_kernel(%arg0: i32, %arg1: i32, %arg2: memref<8x2x96xf32, #tpu.memory_space<vmem>>, %arg3: memref<32x96xbf16, #tpu.memory_space<vmem>>, %arg4: memref<1x32xf32, #tpu.memory_space<vmem>>, %arg5: memref<8x2x32xf32, #tpu.memory_space<vmem>>, %arg6: memref<2x32xf32, #tpu.memory_space<vmem>>) attributes {dimension_semantics = [#tpu.dimension_semantics<parallel>, #tpu.dimension_semantics<arbitrary>], iteration_bounds = array<i64: 1, 1>, scalar_prefetch = 0 : i64, scratch_operands = 1 : i64, tpu.core_type = #tpu.core_type<tc>, window_params = [{transform_indices = @transform_0, window_bounds = array<i64: 8, 2, 96>}, {pipeline_mode = #tpu.pipeline_mode<synchronous>, transform_indices = @transform_1, window_bounds = array<i64: 32, 96>}, {pipeline_mode = #tpu.pipeline_mode<synchronous>, transform_indices = @transform_2, window_bounds = array<i64: 1, 32>}, {transform_indices = @transform_3, window_bounds = array<i64: 8, 2, 32>}]} {
    %c0_i32 = arith.constant 0 : i32
    %0 = arith.cmpi eq, %arg1, %c0_i32 : i32
    %1 = arith.extui %0 : i1 to i32
    %c0_i32_0 = arith.constant 0 : i32
    %2 = arith.cmpi ne, %1, %c0_i32_0 : i32
    scf.if %2 {
      %cst_104 = arith.constant 0.000000e+00 : f32
      %335 = vector.broadcast %cst_104 : f32 to vector<2x32xf32>
      %c0_105 = arith.constant 0 : index
      %c0_106 = arith.constant 0 : index
      %336 = vector.load %arg6[%c0_105, %c0_106] : memref<2x32xf32, #tpu.memory_space<vmem>>, vector<2x32xf32>
      tpu.vector_store %arg6[%c0_105, %c0_106], %335 {strides = array<i32>} : memref<2x32xf32, #tpu.memory_space<vmem>>, vector<2x32xf32>,
    } else {
    }
    %c0 = arith.constant 0 : index
    %c0_1 = arith.constant 0 : index
    %3 = vector.load %arg3[%c0, %c0_1] : memref<32x96xbf16, #tpu.memory_space<vmem>>, vector<32x96xbf16>
    %c0_2 = arith.constant 0 : index
    %c0_3 = arith.constant 0 : index
    %4 = vector.load %arg4[%c0_2, %c0_3] : memref<1x32xf32, #tpu.memory_space<vmem>>, vector<1x32xf32>
    %c0_4 = arith.constant 0 : index
    %c0_5 = arith.constant 0 : index
    %5 = vector.load %arg6[%c0_4, %c0_5] : memref<2x32xf32, #tpu.memory_space<vmem>>, vector<2x32xf32>
    %c0_i32_6 = arith.constant 0 : i32
    %6 = arith.index_cast %c0_i32_6 : i32 to index
    %c0_7 = arith.constant 0 : index
    %c0_8 = arith.constant 0 : index
    %7 = vector.load %arg2[%6, %c0_7, %c0_8] : memref<8x2x96xf32, #tpu.memory_space<vmem>>, vector<1x2x96xf32>
    %8 = vector.shape_cast %7 : vector<1x2x96xf32> to vector<2x96xf32>
    %9 = arith.truncf %5 : vector<2x32xf32> to vector<2x32xbf16>
    %cst = arith.constant dense<0.000000e+00> : vector<2x96xf32>
    %10 = tpu.matmul %9, %3, %cst {dimension_numbers = #tpu.dot_dimension_numbers<[1], [0], [0], [1], [0, 0, 1, 1], [], []>} : vector<2x32xbf16>, vector<32x96xbf16>, vector<2x96xf32> -> vector<2x96xf32>
    %11 = vector.extract_strided_slice %8 {offsets = [0, 0], sizes = [2, 32], strides = [1, 1]} : vector<2x96xf32> to vector<2x32xf32>
    %12 = vector.extract_strided_slice %10 {offsets = [0, 0], sizes = [2, 32], strides = [1, 1]} : vector<2x96xf32> to vector<2x32xf32>
    %13 = arith.addf %11, %12 : vector<2x32xf32>
    %cst_9 = arith.constant 5.000000e-01 : f32
    %14 = vector.broadcast %cst_9 : f32 to vector<2x32xf32>
    %15 = arith.mulf %14, %13 : vector<2x32xf32>
    %16 = math.tanh %15 : vector<2x32xf32>
    %cst_10 = arith.constant 5.000000e-01 : f32
    %17 = vector.broadcast %cst_10 : f32 to vector<2x32xf32>
    %18 = arith.mulf %17, %16 : vector<2x32xf32>
    %cst_11 = arith.constant 5.000000e-01 : f32
    %19 = vector.broadcast %cst_11 : f32 to vector<2x32xf32>
    %20 = arith.addf %18, %19 : vector<2x32xf32>
    %21 = vector.extract_strided_slice %8 {offsets = [0, 32], sizes = [2, 32], strides = [1, 1]} : vector<2x96xf32> to vector<2x32xf32>
    %22 = vector.extract_strided_slice %10 {offsets = [0, 32], sizes = [2, 32], strides = [1, 1]} : vector<2x96xf32> to vector<2x32xf32>
    %23 = arith.addf %21, %22 : vector<2x32xf32>
    %cst_12 = arith.constant 5.000000e-01 : f32
    %24 = vector.broadcast %cst_12 : f32 to vector<2x32xf32>
    %25 = arith.mulf %24, %23 : vector<2x32xf32>
    %26 = math.tanh %25 : vector<2x32xf32>
    %cst_13 = arith.constant 5.000000e-01 : f32
    %27 = vector.broadcast %cst_13 : f32 to vector<2x32xf32>
    %28 = arith.mulf %27, %26 : vector<2x32xf32>
    %cst_14 = arith.constant 5.000000e-01 : f32
    %29 = vector.broadcast %cst_14 : f32 to vector<2x32xf32>
    %30 = arith.addf %28, %29 : vector<2x32xf32>
    %31 = vector.extract_strided_slice %8 {offsets = [0, 64], sizes = [2, 32], strides = [1, 1]} : vector<2x96xf32> to vector<2x32xf32>
    %32 = vector.extract_strided_slice %10 {offsets = [0, 64], sizes = [2, 32], strides = [1, 1]} : vector<2x96xf32> to vector<2x32xf32>
    %33 = vector.broadcast %4 : vector<1x32xf32> to vector<2x32xf32>
    %34 = arith.addf %32, %33 : vector<2x32xf32>
    %35 = arith.mulf %20, %34 : vector<2x32xf32>
    %36 = arith.addf %31, %35 : vector<2x32xf32>
    %37 = math.tanh %36 : vector<2x32xf32>
    %cst_15 = arith.constant 1.000000e+00 : f32
    %38 = vector.broadcast %cst_15 : f32 to vector<2x32xf32>
    %39 = arith.subf %38, %30 : vector<2x32xf32>
    %40 = arith.mulf %39, %37 : vector<2x32xf32>
    %41 = arith.mulf %30, %5 : vector<2x32xf32>
    %42 = arith.addf %40, %41 : vector<2x32xf32>
    %43 = arith.index_cast %c0_i32_6 : i32 to index
    %c0_16 = arith.constant 0 : index
    %c0_17 = arith.constant 0 : index
    %44 = vector.load %arg5[%43, %c0_16, %c0_17] : memref<8x2x32xf32, #tpu.memory_space<vmem>>, vector<1x2x32xf32>
    %45 = vector.shape_cast %44 : vector<1x2x32xf32> to vector<2x32xf32>
    %46 = vector.shape_cast %42 : vector<2x32xf32> to vector<1x2x32xf32>
    tpu.vector_store %arg5[%43, %c0_16, %c0_17], %46 {strides = array<i32>} : memref<8x2x32xf32, #tpu.memory_space<vmem>>, vector<1x2x32xf32>,
    %c1_i32 = arith.constant 1 : i32
    %47 = arith.index_cast %c1_i32 : i32 to index
    %c0_18 = arith.constant 0 : index
    %c0_19 = arith.constant 0 : index
    %48 = vector.load %arg2[%47, %c0_18, %c0_19] : memref<8x2x96xf32, #tpu.memory_space<vmem>>, vector<1x2x96xf32>
    %49 = vector.shape_cast %48 : vector<1x2x96xf32> to vector<2x96xf32>
    %50 = arith.truncf %42 : vector<2x32xf32> to vector<2x32xbf16>
    %cst_20 = arith.constant dense<0.000000e+00> : vector<2x96xf32>
    %51 = tpu.matmul %50, %3, %cst_20 {dimension_numbers = #tpu.dot_dimension_numbers<[1], [0], [0], [1], [0, 0, 1, 1], [], []>} : vector<2x32xbf16>, vector<32x96xbf16>, vector<2x96xf32> -> vector<2x96xf32>
    %52 = vector.extract_strided_slice %49 {offsets = [0, 0], sizes = [2, 32], strides = [1, 1]} : vector<2x96xf32> to vector<2x32xf32>
    %53 = vector.extract_strided_slice %51 {offsets = [0, 0], sizes = [2, 32], strides = [1, 1]} : vector<2x96xf32> to vector<2x32xf32>
    %54 = arith.addf %52, %53 : vector<2x32xf32>
    %cst_21 = arith.constant 5.000000e-01 : f32
    %55 = vector.broadcast %cst_21 : f32 to vector<2x32xf32>
    %56 = arith.mulf %55, %54 : vector<2x32xf32>
    %57 = math.tanh %56 : vector<2x32xf32>
    %cst_22 = arith.constant 5.000000e-01 : f32
    %58 = vector.broadcast %cst_22 : f32 to vector<2x32xf32>
    %59 = arith.mulf %58, %57 : vector<2x32xf32>
    %cst_23 = arith.constant 5.000000e-01 : f32
    %60 = vector.broadcast %cst_23 : f32 to vector<2x32xf32>
    %61 = arith.addf %59, %60 : vector<2x32xf32>
    %62 = vector.extract_strided_slice %49 {offsets = [0, 32], sizes = [2, 32], strides = [1, 1]} : vector<2x96xf32> to vector<2x32xf32>
    %63 = vector.extract_strided_slice %51 {offsets = [0, 32], sizes = [2, 32], strides = [1, 1]} : vector<2x96xf32> to vector<2x32xf32>
    %64 = arith.addf %62, %63 : vector<2x32xf32>
    %cst_24 = arith.constant 5.000000e-01 : f32
    %65 = vector.broadcast %cst_24 : f32 to vector<2x32xf32>
    %66 = arith.mulf %65, %64 : vector<2x32xf32>
    %67 = math.tanh %66 : vector<2x32xf32>
    %cst_25 = arith.constant 5.000000e-01 : f32
    %68 = vector.broadcast %cst_25 : f32 to vector<2x32xf32>
    %69 = arith.mulf %68, %67 : vector<2x32xf32>
    %cst_26 = arith.constant 5.000000e-01 : f32
    %70 = vector.broadcast %cst_26 : f32 to vector<2x32xf32>
    %71 = arith.addf %69, %70 : vector<2x32xf32>
    %72 = vector.extract_strided_slice %49 {offsets = [0, 64], sizes = [2, 32], strides = [1, 1]} : vector<2x96xf32> to vector<2x32xf32>
    %73 = vector.extract_strided_slice %51 {offsets = [0, 64], sizes = [2, 32], strides = [1, 1]} : vector<2x96xf32> to vector<2x32xf32>
    %74 = vector.broadcast %4 : vector<1x32xf32> to vector<2x32xf32>
    %75 = arith.addf %73, %74 : vector<2x32xf32>
    %76 = arith.mulf %61, %75 : vector<2x32xf32>
    %77 = arith.addf %72, %76 : vector<2x32xf32>
    %78 = math.tanh %77 : vector<2x32xf32>
    %cst_27 = arith.constant 1.000000e+00 : f32
    %79 = vector.broadcast %cst_27 : f32 to vector<2x32xf32>
    %80 = arith.subf %79, %71 : vector<2x32xf32>
    %81 = arith.mulf %80, %78 : vector<2x32xf32>
    %82 = arith.mulf %71, %42 : vector<2x32xf32>
    %83 = arith.addf %81, %82 : vector<2x32xf32>
    %84 = arith.index_cast %c1_i32 : i32 to index
    %c0_28 = arith.constant 0 : index
    %c0_29 = arith.constant 0 : index
    %85 = vector.load %arg5[%84, %c0_28, %c0_29] : memref<8x2x32xf32, #tpu.memory_space<vmem>>, vector<1x2x32xf32>
    %86 = vector.shape_cast %85 : vector<1x2x32xf32> to vector<2x32xf32>
    %87 = vector.shape_cast %83 : vector<2x32xf32> to vector<1x2x32xf32>
    tpu.vector_store %arg5[%84, %c0_28, %c0_29], %87 {strides = array<i32>} : memref<8x2x32xf32, #tpu.memory_space<vmem>>, vector<1x2x32xf32>,
    %c2_i32 = arith.constant 2 : i32
    %88 = arith.index_cast %c2_i32 : i32 to index
    %c0_30 = arith.constant 0 : index
    %c0_31 = arith.constant 0 : index
    %89 = vector.load %arg2[%88, %c0_30, %c0_31] : memref<8x2x96xf32, #tpu.memory_space<vmem>>, vector<1x2x96xf32>
    %90 = vector.shape_cast %89 : vector<1x2x96xf32> to vector<2x96xf32>
    %91 = arith.truncf %83 : vector<2x32xf32> to vector<2x32xbf16>
    %cst_32 = arith.constant dense<0.000000e+00> : vector<2x96xf32>
    %92 = tpu.matmul %91, %3, %cst_32 {dimension_numbers = #tpu.dot_dimension_numbers<[1], [0], [0], [1], [0, 0, 1, 1], [], []>} : vector<2x32xbf16>, vector<32x96xbf16>, vector<2x96xf32> -> vector<2x96xf32>
    %93 = vector.extract_strided_slice %90 {offsets = [0, 0], sizes = [2, 32], strides = [1, 1]} : vector<2x96xf32> to vector<2x32xf32>
    %94 = vector.extract_strided_slice %92 {offsets = [0, 0], sizes = [2, 32], strides = [1, 1]} : vector<2x96xf32> to vector<2x32xf32>
    %95 = arith.addf %93, %94 : vector<2x32xf32>
    %cst_33 = arith.constant 5.000000e-01 : f32
    %96 = vector.broadcast %cst_33 : f32 to vector<2x32xf32>
    %97 = arith.mulf %96, %95 : vector<2x32xf32>
    %98 = math.tanh %97 : vector<2x32xf32>
    %cst_34 = arith.constant 5.000000e-01 : f32
    %99 = vector.broadcast %cst_34 : f32 to vector<2x32xf32>
    %100 = arith.mulf %99, %98 : vector<2x32xf32>
    %cst_35 = arith.constant 5.000000e-01 : f32
    %101 = vector.broadcast %cst_35 : f32 to vector<2x32xf32>
    %102 = arith.addf %100, %101 : vector<2x32xf32>
    %103 = vector.extract_strided_slice %90 {offsets = [0, 32], sizes = [2, 32], strides = [1, 1]} : vector<2x96xf32> to vector<2x32xf32>
    %104 = vector.extract_strided_slice %92 {offsets = [0, 32], sizes = [2, 32], strides = [1, 1]} : vector<2x96xf32> to vector<2x32xf32>
    %105 = arith.addf %103, %104 : vector<2x32xf32>
    %cst_36 = arith.constant 5.000000e-01 : f32
    %106 = vector.broadcast %cst_36 : f32 to vector<2x32xf32>
    %107 = arith.mulf %106, %105 : vector<2x32xf32>
    %108 = math.tanh %107 : vector<2x32xf32>
    %cst_37 = arith.constant 5.000000e-01 : f32
    %109 = vector.broadcast %cst_37 : f32 to vector<2x32xf32>
    %110 = arith.mulf %109, %108 : vector<2x32xf32>
    %cst_38 = arith.constant 5.000000e-01 : f32
    %111 = vector.broadcast %cst_38 : f32 to vector<2x32xf32>
    %112 = arith.addf %110, %111 : vector<2x32xf32>
    %113 = vector.extract_strided_slice %90 {offsets = [0, 64], sizes = [2, 32], strides = [1, 1]} : vector<2x96xf32> to vector<2x32xf32>
    %114 = vector.extract_strided_slice %92 {offsets = [0, 64], sizes = [2, 32], strides = [1, 1]} : vector<2x96xf32> to vector<2x32xf32>
    %115 = vector.broadcast %4 : vector<1x32xf32> to vector<2x32xf32>
    %116 = arith.addf %114, %115 : vector<2x32xf32>
    %117 = arith.mulf %102, %116 : vector<2x32xf32>
    %118 = arith.addf %113, %117 : vector<2x32xf32>
    %119 = math.tanh %118 : vector<2x32xf32>
    %cst_39 = arith.constant 1.000000e+00 : f32
    %120 = vector.broadcast %cst_39 : f32 to vector<2x32xf32>
    %121 = arith.subf %120, %112 : vector<2x32xf32>
    %122 = arith.mulf %121, %119 : vector<2x32xf32>
    %123 = arith.mulf %112, %83 : vector<2x32xf32>
    %124 = arith.addf %122, %123 : vector<2x32xf32>
    %125 = arith.index_cast %c2_i32 : i32 to index
    %c0_40 = arith.constant 0 : index
    %c0_41 = arith.constant 0 : index
    %126 = vector.load %arg5[%125, %c0_40, %c0_41] : memref<8x2x32xf32, #tpu.memory_space<vmem>>, vector<1x2x32xf32>
    %127 = vector.shape_cast %126 : vector<1x2x32xf32> to vector<2x32xf32>
    %128 = vector.shape_cast %124 : vector<2x32xf32> to vector<1x2x32xf32>
    tpu.vector_store %arg5[%125, %c0_40, %c0_41], %128 {strides = array<i32>} : memref<8x2x32xf32, #tpu.memory_space<vmem>>, vector<1x2x32xf32>,
    %c3_i32 = arith.constant 3 : i32
    %129 = arith.index_cast %c3_i32 : i32 to index
    %c0_42 = arith.constant 0 : index
    %c0_43 = arith.constant 0 : index
    %130 = vector.load %arg2[%129, %c0_42, %c0_43] : memref<8x2x96xf32, #tpu.memory_space<vmem>>, vector<1x2x96xf32>
    %131 = vector.shape_cast %130 : vector<1x2x96xf32> to vector<2x96xf32>
    %132 = arith.truncf %124 : vector<2x32xf32> to vector<2x32xbf16>
    %cst_44 = arith.constant dense<0.000000e+00> : vector<2x96xf32>
    %133 = tpu.matmul %132, %3, %cst_44 {dimension_numbers = #tpu.dot_dimension_numbers<[1], [0], [0], [1], [0, 0, 1, 1], [], []>} : vector<2x32xbf16>, vector<32x96xbf16>, vector<2x96xf32> -> vector<2x96xf32>
    %134 = vector.extract_strided_slice %131 {offsets = [0, 0], sizes = [2, 32], strides = [1, 1]} : vector<2x96xf32> to vector<2x32xf32>
    %135 = vector.extract_strided_slice %133 {offsets = [0, 0], sizes = [2, 32], strides = [1, 1]} : vector<2x96xf32> to vector<2x32xf32>
    %136 = arith.addf %134, %135 : vector<2x32xf32>
    %cst_45 = arith.constant 5.000000e-01 : f32
    %137 = vector.broadcast %cst_45 : f32 to vector<2x32xf32>
    %138 = arith.mulf %137, %136 : vector<2x32xf32>
    %139 = math.tanh %138 : vector<2x32xf32>
    %cst_46 = arith.constant 5.000000e-01 : f32
    %140 = vector.broadcast %cst_46 : f32 to vector<2x32xf32>
    %141 = arith.mulf %140, %139 : vector<2x32xf32>
    %cst_47 = arith.constant 5.000000e-01 : f32
    %142 = vector.broadcast %cst_47 : f32 to vector<2x32xf32>
    %143 = arith.addf %141, %142 : vector<2x32xf32>
    %144 = vector.extract_strided_slice %131 {offsets = [0, 32], sizes = [2, 32], strides = [1, 1]} : vector<2x96xf32> to vector<2x32xf32>
    %145 = vector.extract_strided_slice %133 {offsets = [0, 32], sizes = [2, 32], strides = [1, 1]} : vector<2x96xf32> to vector<2x32xf32>
    %146 = arith.addf %144, %145 : vector<2x32xf32>
    %cst_48 = arith.constant 5.000000e-01 : f32
    %147 = vector.broadcast %cst_48 : f32 to vector<2x32xf32>
    %148 = arith.mulf %147, %146 : vector<2x32xf32>
    %149 = math.tanh %148 : vector<2x32xf32>
    %cst_49 = arith.constant 5.000000e-01 : f32
    %150 = vector.broadcast %cst_49 : f32 to vector<2x32xf32>
    %151 = arith.mulf %150, %149 : vector<2x32xf32>
    %cst_50 = arith.constant 5.000000e-01 : f32
    %152 = vector.broadcast %cst_50 : f32 to vector<2x32xf32>
    %153 = arith.addf %151, %152 : vector<2x32xf32>
    %154 = vector.extract_strided_slice %131 {offsets = [0, 64], sizes = [2, 32], strides = [1, 1]} : vector<2x96xf32> to vector<2x32xf32>
    %155 = vector.extract_strided_slice %133 {offsets = [0, 64], sizes = [2, 32], strides = [1, 1]} : vector<2x96xf32> to vector<2x32xf32>
    %156 = vector.broadcast %4 : vector<1x32xf32> to vector<2x32xf32>
    %157 = arith.addf %155, %156 : vector<2x32xf32>
    %158 = arith.mulf %143, %157 : vector<2x32xf32>
    %159 = arith.addf %154, %158 : vector<2x32xf32>
    %160 = math.tanh %159 : vector<2x32xf32>
    %cst_51 = arith.constant 1.000000e+00 : f32
    %161 = vector.broadcast %cst_51 : f32 to vector<2x32xf32>
    %162 = arith.subf %161, %153 : vector<2x32xf32>
    %163 = arith.mulf %162, %160 : vector<2x32xf32>
    %164 = arith.mulf %153, %124 : vector<2x32xf32>
    %165 = arith.addf %163, %164 : vector<2x32xf32>
    %166 = arith.index_cast %c3_i32 : i32 to index
    %c0_52 = arith.constant 0 : index
    %c0_53 = arith.constant 0 : index
    %167 = vector.load %arg5[%166, %c0_52, %c0_53] : memref<8x2x32xf32, #tpu.memory_space<vmem>>, vector<1x2x32xf32>
    %168 = vector.shape_cast %167 : vector<1x2x32xf32> to vector<2x32xf32>
    %169 = vector.shape_cast %165 : vector<2x32xf32> to vector<1x2x32xf32>
    tpu.vector_store %arg5[%166, %c0_52, %c0_53], %169 {strides = array<i32>} : memref<8x2x32xf32, #tpu.memory_space<vmem>>, vector<1x2x32xf32>,
    %c4_i32 = arith.constant 4 : i32
    %170 = arith.index_cast %c4_i32 : i32 to index
    %c0_54 = arith.constant 0 : index
    %c0_55 = arith.constant 0 : index
    %171 = vector.load %arg2[%170, %c0_54, %c0_55] : memref<8x2x96xf32, #tpu.memory_space<vmem>>, vector<1x2x96xf32>
    %172 = vector.shape_cast %171 : vector<1x2x96xf32> to vector<2x96xf32>
    %173 = arith.truncf %165 : vector<2x32xf32> to vector<2x32xbf16>
    %cst_56 = arith.constant dense<0.000000e+00> : vector<2x96xf32>
    %174 = tpu.matmul %173, %3, %cst_56 {dimension_numbers = #tpu.dot_dimension_numbers<[1], [0], [0], [1], [0, 0, 1, 1], [], []>} : vector<2x32xbf16>, vector<32x96xbf16>, vector<2x96xf32> -> vector<2x96xf32>
    %175 = vector.extract_strided_slice %172 {offsets = [0, 0], sizes = [2, 32], strides = [1, 1]} : vector<2x96xf32> to vector<2x32xf32>
    %176 = vector.extract_strided_slice %174 {offsets = [0, 0], sizes = [2, 32], strides = [1, 1]} : vector<2x96xf32> to vector<2x32xf32>
    %177 = arith.addf %175, %176 : vector<2x32xf32>
    %cst_57 = arith.constant 5.000000e-01 : f32
    %178 = vector.broadcast %cst_57 : f32 to vector<2x32xf32>
    %179 = arith.mulf %178, %177 : vector<2x32xf32>
    %180 = math.tanh %179 : vector<2x32xf32>
    %cst_58 = arith.constant 5.000000e-01 : f32
    %181 = vector.broadcast %cst_58 : f32 to vector<2x32xf32>
    %182 = arith.mulf %181, %180 : vector<2x32xf32>
    %cst_59 = arith.constant 5.000000e-01 : f32
    %183 = vector.broadcast %cst_59 : f32 to vector<2x32xf32>
    %184 = arith.addf %182, %183 : vector<2x32xf32>
    %185 = vector.extract_strided_slice %172 {offsets = [0, 32], sizes = [2, 32], strides = [1, 1]} : vector<2x96xf32> to vector<2x32xf32>
    %186 = vector.extract_strided_slice %174 {offsets = [0, 32], sizes = [2, 32], strides = [1, 1]} : vector<2x96xf32> to vector<2x32xf32>
    %187 = arith.addf %185, %186 : vector<2x32xf32>
    %cst_60 = arith.constant 5.000000e-01 : f32
    %188 = vector.broadcast %cst_60 : f32 to vector<2x32xf32>
    %189 = arith.mulf %188, %187 : vector<2x32xf32>
    %190 = math.tanh %189 : vector<2x32xf32>
    %cst_61 = arith.constant 5.000000e-01 : f32
    %191 = vector.broadcast %cst_61 : f32 to vector<2x32xf32>
    %192 = arith.mulf %191, %190 : vector<2x32xf32>
    %cst_62 = arith.constant 5.000000e-01 : f32
    %193 = vector.broadcast %cst_62 : f32 to vector<2x32xf32>
    %194 = arith.addf %192, %193 : vector<2x32xf32>
    %195 = vector.extract_strided_slice %172 {offsets = [0, 64], sizes = [2, 32], strides = [1, 1]} : vector<2x96xf32> to vector<2x32xf32>
    %196 = vector.extract_strided_slice %174 {offsets = [0, 64], sizes = [2, 32], strides = [1, 1]} : vector<2x96xf32> to vector<2x32xf32>
    %197 = vector.broadcast %4 : vector<1x32xf32> to vector<2x32xf32>
    %198 = arith.addf %196, %197 : vector<2x32xf32>
    %199 = arith.mulf %184, %198 : vector<2x32xf32>
    %200 = arith.addf %195, %199 : vector<2x32xf32>
    %201 = math.tanh %200 : vector<2x32xf32>
    %cst_63 = arith.constant 1.000000e+00 : f32
    %202 = vector.broadcast %cst_63 : f32 to vector<2x32xf32>
    %203 = arith.subf %202, %194 : vector<2x32xf32>
    %204 = arith.mulf %203, %201 : vector<2x32xf32>
    %205 = arith.mulf %194, %165 : vector<2x32xf32>
    %206 = arith.addf %204, %205 : vector<2x32xf32>
    %207 = arith.index_cast %c4_i32 : i32 to index
    %c0_64 = arith.constant 0 : index
    %c0_65 = arith.constant 0 : index
    %208 = vector.load %arg5[%207, %c0_64, %c0_65] : memref<8x2x32xf32, #tpu.memory_space<vmem>>, vector<1x2x32xf32>
    %209 = vector.shape_cast %208 : vector<1x2x32xf32> to vector<2x32xf32>
    %210 = vector.shape_cast %206 : vector<2x32xf32> to vector<1x2x32xf32>
    tpu.vector_store %arg5[%207, %c0_64, %c0_65], %210 {strides = array<i32>} : memref<8x2x32xf32, #tpu.memory_space<vmem>>, vector<1x2x32xf32>,
    %c5_i32 = arith.constant 5 : i32
    %211 = arith.index_cast %c5_i32 : i32 to index
    %c0_66 = arith.constant 0 : index
    %c0_67 = arith.constant 0 : index
    %212 = vector.load %arg2[%211, %c0_66, %c0_67] : memref<8x2x96xf32, #tpu.memory_space<vmem>>, vector<1x2x96xf32>
    %213 = vector.shape_cast %212 : vector<1x2x96xf32> to vector<2x96xf32>
    %214 = arith.truncf %206 : vector<2x32xf32> to vector<2x32xbf16>
    %cst_68 = arith.constant dense<0.000000e+00> : vector<2x96xf32>
    %215 = tpu.matmul %214, %3, %cst_68 {dimension_numbers = #tpu.dot_dimension_numbers<[1], [0], [0], [1], [0, 0, 1, 1], [], []>} : vector<2x32xbf16>, vector<32x96xbf16>, vector<2x96xf32> -> vector<2x96xf32>
    %216 = vector.extract_strided_slice %213 {offsets = [0, 0], sizes = [2, 32], strides = [1, 1]} : vector<2x96xf32> to vector<2x32xf32>
    %217 = vector.extract_strided_slice %215 {offsets = [0, 0], sizes = [2, 32], strides = [1, 1]} : vector<2x96xf32> to vector<2x32xf32>
    %218 = arith.addf %216, %217 : vector<2x32xf32>
    %cst_69 = arith.constant 5.000000e-01 : f32
    %219 = vector.broadcast %cst_69 : f32 to vector<2x32xf32>
    %220 = arith.mulf %219, %218 : vector<2x32xf32>
    %221 = math.tanh %220 : vector<2x32xf32>
    %cst_70 = arith.constant 5.000000e-01 : f32
    %222 = vector.broadcast %cst_70 : f32 to vector<2x32xf32>
    %223 = arith.mulf %222, %221 : vector<2x32xf32>
    %cst_71 = arith.constant 5.000000e-01 : f32
    %224 = vector.broadcast %cst_71 : f32 to vector<2x32xf32>
    %225 = arith.addf %223, %224 : vector<2x32xf32>
    %226 = vector.extract_strided_slice %213 {offsets = [0, 32], sizes = [2, 32], strides = [1, 1]} : vector<2x96xf32> to vector<2x32xf32>
    %227 = vector.extract_strided_slice %215 {offsets = [0, 32], sizes = [2, 32], strides = [1, 1]} : vector<2x96xf32> to vector<2x32xf32>
    %228 = arith.addf %226, %227 : vector<2x32xf32>
    %cst_72 = arith.constant 5.000000e-01 : f32
    %229 = vector.broadcast %cst_72 : f32 to vector<2x32xf32>
    %230 = arith.mulf %229, %228 : vector<2x32xf32>
    %231 = math.tanh %230 : vector<2x32xf32>
    %cst_73 = arith.constant 5.000000e-01 : f32
    %232 = vector.broadcast %cst_73 : f32 to vector<2x32xf32>
    %233 = arith.mulf %232, %231 : vector<2x32xf32>
    %cst_74 = arith.constant 5.000000e-01 : f32
    %234 = vector.broadcast %cst_74 : f32 to vector<2x32xf32>
    %235 = arith.addf %233, %234 : vector<2x32xf32>
    %236 = vector.extract_strided_slice %213 {offsets = [0, 64], sizes = [2, 32], strides = [1, 1]} : vector<2x96xf32> to vector<2x32xf32>
    %237 = vector.extract_strided_slice %215 {offsets = [0, 64], sizes = [2, 32], strides = [1, 1]} : vector<2x96xf32> to vector<2x32xf32>
    %238 = vector.broadcast %4 : vector<1x32xf32> to vector<2x32xf32>
    %239 = arith.addf %237, %238 : vector<2x32xf32>
    %240 = arith.mulf %225, %239 : vector<2x32xf32>
    %241 = arith.addf %236, %240 : vector<2x32xf32>
    %242 = math.tanh %241 : vector<2x32xf32>
    %cst_75 = arith.constant 1.000000e+00 : f32
    %243 = vector.broadcast %cst_75 : f32 to vector<2x32xf32>
    %244 = arith.subf %243, %235 : vector<2x32xf32>
    %245 = arith.mulf %244, %242 : vector<2x32xf32>
    %246 = arith.mulf %235, %206 : vector<2x32xf32>
    %247 = arith.addf %245, %246 : vector<2x32xf32>
    %248 = arith.index_cast %c5_i32 : i32 to index
    %c0_76 = arith.constant 0 : index
    %c0_77 = arith.constant 0 : index
    %249 = vector.load %arg5[%248, %c0_76, %c0_77] : memref<8x2x32xf32, #tpu.memory_space<vmem>>, vector<1x2x32xf32>
    %250 = vector.shape_cast %249 : vector<1x2x32xf32> to vector<2x32xf32>
    %251 = vector.shape_cast %247 : vector<2x32xf32> to vector<1x2x32xf32>
    tpu.vector_store %arg5[%248, %c0_76, %c0_77], %251 {strides = array<i32>} : memref<8x2x32xf32, #tpu.memory_space<vmem>>, vector<1x2x32xf32>,
    %c6_i32 = arith.constant 6 : i32
    %252 = arith.index_cast %c6_i32 : i32 to index
    %c0_78 = arith.constant 0 : index
    %c0_79 = arith.constant 0 : index
    %253 = vector.load %arg2[%252, %c0_78, %c0_79] : memref<8x2x96xf32, #tpu.memory_space<vmem>>, vector<1x2x96xf32>
    %254 = vector.shape_cast %253 : vector<1x2x96xf32> to vector<2x96xf32>
    %255 = arith.truncf %247 : vector<2x32xf32> to vector<2x32xbf16>
    %cst_80 = arith.constant dense<0.000000e+00> : vector<2x96xf32>
    %256 = tpu.matmul %255, %3, %cst_80 {dimension_numbers = #tpu.dot_dimension_numbers<[1], [0], [0], [1], [0, 0, 1, 1], [], []>} : vector<2x32xbf16>, vector<32x96xbf16>, vector<2x96xf32> -> vector<2x96xf32>
    %257 = vector.extract_strided_slice %254 {offsets = [0, 0], sizes = [2, 32], strides = [1, 1]} : vector<2x96xf32> to vector<2x32xf32>
    %258 = vector.extract_strided_slice %256 {offsets = [0, 0], sizes = [2, 32], strides = [1, 1]} : vector<2x96xf32> to vector<2x32xf32>
    %259 = arith.addf %257, %258 : vector<2x32xf32>
    %cst_81 = arith.constant 5.000000e-01 : f32
    %260 = vector.broadcast %cst_81 : f32 to vector<2x32xf32>
    %261 = arith.mulf %260, %259 : vector<2x32xf32>
    %262 = math.tanh %261 : vector<2x32xf32>
    %cst_82 = arith.constant 5.000000e-01 : f32
    %263 = vector.broadcast %cst_82 : f32 to vector<2x32xf32>
    %264 = arith.mulf %263, %262 : vector<2x32xf32>
    %cst_83 = arith.constant 5.000000e-01 : f32
    %265 = vector.broadcast %cst_83 : f32 to vector<2x32xf32>
    %266 = arith.addf %264, %265 : vector<2x32xf32>
    %267 = vector.extract_strided_slice %254 {offsets = [0, 32], sizes = [2, 32], strides = [1, 1]} : vector<2x96xf32> to vector<2x32xf32>
    %268 = vector.extract_strided_slice %256 {offsets = [0, 32], sizes = [2, 32], strides = [1, 1]} : vector<2x96xf32> to vector<2x32xf32>
    %269 = arith.addf %267, %268 : vector<2x32xf32>
    %cst_84 = arith.constant 5.000000e-01 : f32
    %270 = vector.broadcast %cst_84 : f32 to vector<2x32xf32>
    %271 = arith.mulf %270, %269 : vector<2x32xf32>
    %272 = math.tanh %271 : vector<2x32xf32>
    %cst_85 = arith.constant 5.000000e-01 : f32
    %273 = vector.broadcast %cst_85 : f32 to vector<2x32xf32>
    %274 = arith.mulf %273, %272 : vector<2x32xf32>
    %cst_86 = arith.constant 5.000000e-01 : f32
    %275 = vector.broadcast %cst_86 : f32 to vector<2x32xf32>
    %276 = arith.addf %274, %275 : vector<2x32xf32>
    %277 = vector.extract_strided_slice %254 {offsets = [0, 64], sizes = [2, 32], strides = [1, 1]} : vector<2x96xf32> to vector<2x32xf32>
    %278 = vector.extract_strided_slice %256 {offsets = [0, 64], sizes = [2, 32], strides = [1, 1]} : vector<2x96xf32> to vector<2x32xf32>
    %279 = vector.broadcast %4 : vector<1x32xf32> to vector<2x32xf32>
    %280 = arith.addf %278, %279 : vector<2x32xf32>
    %281 = arith.mulf %266, %280 : vector<2x32xf32>
    %282 = arith.addf %277, %281 : vector<2x32xf32>
    %283 = math.tanh %282 : vector<2x32xf32>
    %cst_87 = arith.constant 1.000000e+00 : f32
    %284 = vector.broadcast %cst_87 : f32 to vector<2x32xf32>
    %285 = arith.subf %284, %276 : vector<2x32xf32>
    %286 = arith.mulf %285, %283 : vector<2x32xf32>
    %287 = arith.mulf %276, %247 : vector<2x32xf32>
    %288 = arith.addf %286, %287 : vector<2x32xf32>
    %289 = arith.index_cast %c6_i32 : i32 to index
    %c0_88 = arith.constant 0 : index
    %c0_89 = arith.constant 0 : index
    %290 = vector.load %arg5[%289, %c0_88, %c0_89] : memref<8x2x32xf32, #tpu.memory_space<vmem>>, vector<1x2x32xf32>
    %291 = vector.shape_cast %290 : vector<1x2x32xf32> to vector<2x32xf32>
    %292 = vector.shape_cast %288 : vector<2x32xf32> to vector<1x2x32xf32>
    tpu.vector_store %arg5[%289, %c0_88, %c0_89], %292 {strides = array<i32>} : memref<8x2x32xf32, #tpu.memory_space<vmem>>, vector<1x2x32xf32>,
    %c7_i32 = arith.constant 7 : i32
    %293 = arith.index_cast %c7_i32 : i32 to index
    %c0_90 = arith.constant 0 : index
    %c0_91 = arith.constant 0 : index
    %294 = vector.load %arg2[%293, %c0_90, %c0_91] : memref<8x2x96xf32, #tpu.memory_space<vmem>>, vector<1x2x96xf32>
    %295 = vector.shape_cast %294 : vector<1x2x96xf32> to vector<2x96xf32>
    %296 = arith.truncf %288 : vector<2x32xf32> to vector<2x32xbf16>
    %cst_92 = arith.constant dense<0.000000e+00> : vector<2x96xf32>
    %297 = tpu.matmul %296, %3, %cst_92 {dimension_numbers = #tpu.dot_dimension_numbers<[1], [0], [0], [1], [0, 0, 1, 1], [], []>} : vector<2x32xbf16>, vector<32x96xbf16>, vector<2x96xf32> -> vector<2x96xf32>
    %298 = vector.extract_strided_slice %295 {offsets = [0, 0], sizes = [2, 32], strides = [1, 1]} : vector<2x96xf32> to vector<2x32xf32>
    %299 = vector.extract_strided_slice %297 {offsets = [0, 0], sizes = [2, 32], strides = [1, 1]} : vector<2x96xf32> to vector<2x32xf32>
    %300 = arith.addf %298, %299 : vector<2x32xf32>
    %cst_93 = arith.constant 5.000000e-01 : f32
    %301 = vector.broadcast %cst_93 : f32 to vector<2x32xf32>
    %302 = arith.mulf %301, %300 : vector<2x32xf32>
    %303 = math.tanh %302 : vector<2x32xf32>
    %cst_94 = arith.constant 5.000000e-01 : f32
    %304 = vector.broadcast %cst_94 : f32 to vector<2x32xf32>
    %305 = arith.mulf %304, %303 : vector<2x32xf32>
    %cst_95 = arith.constant 5.000000e-01 : f32
    %306 = vector.broadcast %cst_95 : f32 to vector<2x32xf32>
    %307 = arith.addf %305, %306 : vector<2x32xf32>
    %308 = vector.extract_strided_slice %295 {offsets = [0, 32], sizes = [2, 32], strides = [1, 1]} : vector<2x96xf32> to vector<2x32xf32>
    %309 = vector.extract_strided_slice %297 {offsets = [0, 32], sizes = [2, 32], strides = [1, 1]} : vector<2x96xf32> to vector<2x32xf32>
    %310 = arith.addf %308, %309 : vector<2x32xf32>
    %cst_96 = arith.constant 5.000000e-01 : f32
    %311 = vector.broadcast %cst_96 : f32 to vector<2x32xf32>
    %312 = arith.mulf %311, %310 : vector<2x32xf32>
    %313 = math.tanh %312 : vector<2x32xf32>
    %cst_97 = arith.constant 5.000000e-01 : f32
    %314 = vector.broadcast %cst_97 : f32 to vector<2x32xf32>
    %315 = arith.mulf %314, %313 : vector<2x32xf32>
    %cst_98 = arith.constant 5.000000e-01 : f32
    %316 = vector.broadcast %cst_98 : f32 to vector<2x32xf32>
    %317 = arith.addf %315, %316 : vector<2x32xf32>
    %318 = vector.extract_strided_slice %295 {offsets = [0, 64], sizes = [2, 32], strides = [1, 1]} : vector<2x96xf32> to vector<2x32xf32>
    %319 = vector.extract_strided_slice %297 {offsets = [0, 64], sizes = [2, 32], strides = [1, 1]} : vector<2x96xf32> to vector<2x32xf32>
    %320 = vector.broadcast %4 : vector<1x32xf32> to vector<2x32xf32>
    %321 = arith.addf %319, %320 : vector<2x32xf32>
    %322 = arith.mulf %307, %321 : vector<2x32xf32>
    %323 = arith.addf %318, %322 : vector<2x32xf32>
    %324 = math.tanh %323 : vector<2x32xf32>
    %cst_99 = arith.constant 1.000000e+00 : f32
    %325 = vector.broadcast %cst_99 : f32 to vector<2x32xf32>
    %326 = arith.subf %325, %317 : vector<2x32xf32>
    %327 = arith.mulf %326, %324 : vector<2x32xf32>
    %328 = arith.mulf %317, %288 : vector<2x32xf32>
    %329 = arith.addf %327, %328 : vector<2x32xf32>
    %330 = arith.index_cast %c7_i32 : i32 to index
    %c0_100 = arith.constant 0 : index
    %c0_101 = arith.constant 0 : index
    %331 = vector.load %arg5[%330, %c0_100, %c0_101] : memref<8x2x32xf32, #tpu.memory_space<vmem>>, vector<1x2x32xf32>
    %332 = vector.shape_cast %331 : vector<1x2x32xf32> to vector<2x32xf32>
    %333 = vector.shape_cast %329 : vector<2x32xf32> to vector<1x2x32xf32>
    tpu.vector_store %arg5[%330, %c0_100, %c0_101], %333 {strides = array<i32>} : memref<8x2x32xf32, #tpu.memory_space<vmem>>, vector<1x2x32xf32>,
    %c8_i32 = arith.constant 8 : i32
    %c0_102 = arith.constant 0 : index
    %c0_103 = arith.constant 0 : index
    %334 = vector.load %arg6[%c0_102, %c0_103] : memref<2x32xf32, #tpu.memory_space<vmem>>, vector<2x32xf32>
    tpu.vector_store %arg6[%c0_102, %c0_103], %329 {strides = array<i32>} : memref<2x32xf32, #tpu.memory_space<vmem>>, vector<2x32xf32>,
    return
  }
  func.func @transform_0(%arg0: i32, %arg1: i32) -> (i32, i32, i32) {
    %c0_i32 = arith.constant 0 : i32
    %c0_i32_0 = arith.constant 0 : i32
    return %arg1, %arg0, %c0_i32 : i32, i32, i32
  }
  func.func @transform_1(%arg0: i32, %arg1: i32) -> (i32, i32) {
    %c0_i32 = arith.constant 0 : i32
    %c0_i32_0 = arith.constant 0 : i32
    %c0_i32_1 = arith.constant 0 : i32
    return %c0_i32, %c0_i32_0 : i32, i32
  }
  func.func @transform_2(%arg0: i32, %arg1: i32) -> (i32, i32) {
    %c0_i32 = arith.constant 0 : i32
    %c0_i32_0 = arith.constant 0 : i32
    %c0_i32_1 = arith.constant 0 : i32
    return %c0_i32, %c0_i32_0 : i32, i32
  }
  func.func @transform_3(%arg0: i32, %arg1: i32) -> (i32, i32, i32) {
    %c0_i32 = arith.constant 0 : i32
    %c0_i32_0 = arith.constant 0 : i32
    return %arg1, %arg0, %c0_i32 : i32, i32, i32
  }
}

</mosaic_0001>

<llo_original>
// kernel: tpu_custom_call.1
$region0: #{tpu_custom_call.1}
  #allocation0 [shape = 'u32[]', space=smem, size = 0x4, offset = 0x4, fixed_abs, tag = 'smem constant byte address 0x4 - core index']
  #allocation1 [shape = 'u32[144,128]{1,0:T(1,128)}', space=vmem, size = 0x12000, scoped, tag = 'internal scratch']
  #allocation2 [shape = 'f32[2,32]{1,0:T(2,128)}', space=vmem, size = 0x400, scoped, tag = 'scratch operand']
  %s0 = inlined_call_operand.hbm [shape: f32[8,2,96], index: 0, kind: input, shape index: {}]
  %s1 = inlined_call_operand.hbm [shape: bf16[32,96], index: 1, kind: input, shape index: {}]
  %s2 = inlined_call_operand.vmem [shape: f32[1,32], index: 2, kind: input, shape index: {}]
  %s3 = inlined_call_operand.hbm [shape: f32[8,2,32], index: 3, kind: output, shape index: {}]
  %s4 = sld [smem:[#allocation0]]
  $region34: #{tpu_custom_call.1} parent=0
    _
  %s6 = ssub.s32 1, %s4
  %s7 = scalar_select 0, %s6, %s4
  $region1: #{tpu_custom_call.1} parent=0
    #allocation3 [shape = 'u8[8192]{0}', space=vmem, size = 0x2000, scoped, tag = 'input window, operand 0, single buffered']
    #allocation4 [shape = 's32[1]{0}', space=sflag, size = 0x4, scoped, tag = 'scoped memory for tpu_custom_call.1']
    #allocation5 [shape = 's32[1]{0}', space=sflag, size = 0x4, scoped, tag = 'scoped memory for tpu_custom_call.1']
    #allocation6 [shape = 'u8[8192]{0}', space=vmem, size = 0x2000, scoped, tag = 'input window, operand 1, single buffered']
    #allocation7 [shape = 's32[1]{0}', space=sflag, size = 0x4, scoped, tag = 'scoped memory for tpu_custom_call.1']
    #allocation8 [shape = 'u8[8192]{0}', space=vmem, size = 0x2000, scoped, tag = 'output window, operand 0, single buffered']
    %8 = vsyncpa [#allocation4], 0
    %9 = vsyncpa [#allocation7], 0
    %10 = vsyncpa [#allocation5], 0
    // Predicated region
    $region2: #{tpu_custom_call.1} parent=1 // pred_check
      _
    $region3: #{tpu_custom_call.1} parent=1 // pred_check_branch
      %12 = sbr.rel (0) target = $region5
    $region4: #{tpu_custom_call.1} parent=1 // pred_region
      %s14 = ssub.s32 256, 256
      %15 = vsyncadd [#allocation4], %s14
      %s16 = sshll.u32 [#allocation3], 4
      %s17 = int_to_ptr.vmem [resolvable:$true] %s16
      %22 = dma.hbm_to_vmem [thread:$0]  %s0, 256, %s17, [#allocation4], 32, 32, 2
    $region5: #{tpu_custom_call.1} parent=1 // pred_fallthru
      _
    // Predicated region
    $region6: #{tpu_custom_call.1} parent=1 // pred_check
      _
    $region7: #{tpu_custom_call.1} parent=1 // pred_check_branch
      %24 = sbr.rel (0) target = $region9
    $region8: #{tpu_custom_call.1} parent=1 // pred_region
      %s26 = ssub.s32 256, 256
      %27 = vsyncadd [#allocation7], %s26
      %s28 = sshll.u32 [#allocation6], 4
      %s29 = int_to_ptr.vmem [resolvable:$true] %s28
      %34 = dma.hbm_to_vmem [thread:$0]  %s1, 256, %s29, [#allocation7], 64, 64, 4
    $region9: #{tpu_custom_call.1} parent=1 // pred_fallthru
      _
    // Predicated region
    $region10: #{tpu_custom_call.1} parent=1 // pred_check
      _
    $region11: #{tpu_custom_call.1} parent=1 // pred_check_branch
      %36 = sbr.rel (0) target = $region13
    $region12: #{tpu_custom_call.1} parent=1 // pred_region
      _
    $region13: #{tpu_custom_call.1} parent=1 // pred_fallthru
      _
    // Predicated region
    $region14: #{tpu_custom_call.1} parent=1 // pred_check
      _
    $region15: #{tpu_custom_call.1} parent=1 // pred_check_branch
      %38 = sbr.rel (0) target = $region17
    $region16: #{tpu_custom_call.1} parent=1 // pred_region
      %39 = dma.done [#allocation4], 256
    $region17: #{tpu_custom_call.1} parent=1 // pred_fallthru
      _
    // Predicated region
    $region18: #{tpu_custom_call.1} parent=1 // pred_check
      _
    $region19: #{tpu_custom_call.1} parent=1 // pred_check_branch
      %41 = sbr.rel (0) target = $region21
    $region20: #{tpu_custom_call.1} parent=1 // pred_region
      %42 = dma.done [#allocation7], 256
    $region21: #{tpu_custom_call.1} parent=1 // pred_fallthru
      _
    %p44 = scmp.eq.s32.totalorder 0, 0
    // Predicated region
    $region22: #{tpu_custom_call.1} parent=1 // pred_check
      %p45 = pneg %p44
    $region23: #{tpu_custom_call.1} parent=1 // pred_check_branch
      %47 = sbr.rel (%p45) target = $region25
    $region24: #{tpu_custom_call.1} parent=1 // pred_region
      %vm48 = vcmask 254976
      %49 = vst.msk [vmem:[#allocation2] sm:$0x3] %vm48, 0.0
    $region25: #{tpu_custom_call.1} parent=1 // pred_fallthru
      _
    %v50 = vld [vmem:[#allocation6] sm:$0xf]
    %v51 = vld [vmem:[#allocation6 + $0x4] sm:$0xf]
    %v52 = vld [vmem:[#allocation6 + $0x8] sm:$0xf]
    %v53 = vld [vmem:[#allocation6 + $0xc] sm:$0xf]
    %v54 = vld [vmem:[%s2] sm:$0x1]
    %v55 = vld [vmem:[#allocation2] sm:$0x3]
    %v56 = vld [vmem:[#allocation3] sm:$0x3]
    %v57 = vpack.c.bf16 %v55, %v55
    %v62 = vunpack.c.l.b16 %v50
    %v63 = vunpack.c.l.b16 %v51
    %v64 = vunpack.c.l.b16 %v52
    %v65 = vunpack.c.l.b16 %v53
    %v66 = vpack.c.b16 %v63, %v62
    %v67 = vpack.c.b16 %v65, %v64
    %vm70 = vcmask 261120
    %v72 = vsel %vm70, %v57, 0
    %74 = vmatprep.subr.bf16.mxu0 0
    %75 = vmatpush1.bf16.msra.mxu0 %v66
    %76 = vmatprep.subr.bf16.mxu0 0
    %77 = vmatpush1.bf16.msra.mxu0 %v67
    %78 = vmatprep.subr.bf16.mxu0 0
    %79 = vmatpush1.bf16.msra.mxu0 0
    %80 = vmatprep.subr.bf16.mxu0 0
    %81 = vmatpush1.bf16.msra.mxu0 0
    %82 = vmatprep.subr.bf16.mxu0 0
    %83 = vmatpush1.bf16.msra.mxu0 0
    %84 = vmatprep.subr.bf16.mxu0 0
    %85 = vmatpush1.bf16.msra.mxu0 0
    %86 = vmatprep.subr.bf16.mxu0 0
    %87 = vmatpush1.bf16.msra.mxu0 0
    %88 = vmatprep.subr.bf16.mxu0 0
    %89 = vmatpush1.bf16.msra.mxu0 0
    %90 = vmatprep.subr.bf16.mxu0 0
    %91 = vmatpush1.bf16.msra.mxu0 0
    %92 = vmatprep.subr.bf16.mxu0 0
    %93 = vmatpush1.bf16.msra.mxu0 0
    %94 = vmatprep.subr.bf16.mxu0 0
    %95 = vmatpush1.bf16.msra.mxu0 0
    %96 = vmatprep.subr.bf16.mxu0 0
    %97 = vmatpush1.bf16.msra.mxu0 0
    %98 = vmatprep.subr.bf16.mxu0 0
    %99 = vmatpush1.bf16.msra.mxu0 0
    %100 = vmatprep.subr.bf16.mxu0 0
    %101 = vmatpush1.bf16.msra.mxu0 0
    %102 = vmatprep.subr.bf16.mxu0 0
    %103 = vmatpush1.bf16.msra.mxu0 0
    %104 = vmatprep.subr.bf16.mxu0 0
    %105 = vmatpush1.bf16.msra.mxu0 0
    %106 = vmatprep.mubr.bf16.mxu0 0
    %107 = vmatmul.mubr.bf16.gmra.mrb[0].mxu0 %v72
    %v108 = vpop.f32.mrb[0].mxu0
    %v109 = vadd.f32 0.0, %v108
    %v110 = vpop.f32.mrb[0].mxu0
    %v111 = vpop.f32.mrb[0].mxu0
    %v112 = vpop.f32.mrb[0].mxu0
    %113 = vdwg.mxu0
    %v114 = vadd.f32 %v56, %v109
    %v115 = vmul.f32 %v114, 0.5
    %v116 = vtanh.pop %v115
    %v117 = vmul.f32 %v116, 0.5
    %v118 = vadd.f32 %v117, 0.5
    %v120 = vlaneseq
    %v121 = vshrl.u32 %v120, 7
    %v122 = vsub.s32 0, %v121
    %v123 = vrot.slane %v54, %v122
    %124 = vrot.lane.b32.xlu0 %v123, 64
    %v125 = vpop.permute.xlu0 %124
    %v127 = vadd.f32 %v109, %v125
    %129 = vrot.lane.b32.xlu0 %v127, 64
    %v130 = vpop.permute.xlu0 %129
    %v132 = vmul.f32 %v118, %v130
    %134 = vrot.lane.b32.xlu0 %v132, 64
    %v135 = vpop.permute.xlu0 %134
    %v137 = vadd.f32 %v56, %v135
    %v138 = vtanh.pop %v137
    %v139 = vsub.f32 1.0, %v118
    %141 = vrot.lane.b32.xlu0 %v138, 96
    %v142 = vpop.permute.xlu0 %141
    %v144 = vmul.f32 %v139, %v142
    %146 = vrot.lane.b32.xlu0 %v55, 32
    %v147 = vpop.permute.xlu0 %146
    %v149 = vmul.f32 %v118, %v147
    %v150 = vadd.f32 %v144, %v149
    %152 = vrot.lane.b32.xlu0 %v150, 96
    %v153 = vpop.permute.xlu0 %152
    %vm155 = vcmask 254976
    %156 = vst.msk [vmem:[#allocation8] sm:$0x3] %vm155, %v153
    %s157 = scalar_lea.vmem [#allocation3], 2
    %v158 = vld [vmem:[%s157] sm:$0x3]
    %v159 = vpack.c.bf16 %v150, %v150
    %161 = vrot.lane.b32.xlu0 %v159, 96
    %v162 = vpop.permute.xlu0 %161
    %v164 = vsel %vm70, %v162, 0
    %166 = vmatprep.subr.bf16.mxu0 0
    %167 = vmatpush1.bf16.msra.mxu0 %v66
    %168 = vmatprep.subr.bf16.mxu0 0
    %169 = vmatpush1.bf16.msra.mxu0 %v67
    %170 = vmatprep.subr.bf16.mxu0 0
    %171 = vmatpush1.bf16.msra.mxu0 0
    %172 = vmatprep.subr.bf16.mxu0 0
    %173 = vmatpush1.bf16.msra.mxu0 0
    %174 = vmatprep.subr.bf16.mxu0 0
    %175 = vmatpush1.bf16.msra.mxu0 0
    %176 = vmatprep.subr.bf16.mxu0 0
    %177 = vmatpush1.bf16.msra.mxu0 0
    %178 = vmatprep.subr.bf16.mxu0 0
    %179 = vmatpush1.bf16.msra.mxu0 0
    %180 = vmatprep.subr.bf16.mxu0 0
    %181 = vmatpush1.bf16.msra.mxu0 0
    %182 = vmatprep.subr.bf16.mxu0 0
    %183 = vmatpush1.bf16.msra.mxu0 0
    %184 = vmatprep.subr.bf16.mxu0 0
    %185 = vmatpush1.bf16.msra.mxu0 0
    %186 = vmatprep.subr.bf16.mxu0 0
    %187 = vmatpush1.bf16.msra.mxu0 0
    %188 = vmatprep.subr.bf16.mxu0 0
    %189 = vmatpush1.bf16.msra.mxu0 0
    %190 = vmatprep.subr.bf16.mxu0 0
    %191 = vmatpush1.bf16.msra.mxu0 0
    %192 = vmatprep.subr.bf16.mxu0 0
    %193 = vmatpush1.bf16.msra.mxu0 0
    %194 = vmatprep.subr.bf16.mxu0 0
    %195 = vmatpush1.bf16.msra.mxu0 0
    %196 = vmatprep.subr.bf16.mxu0 0
    %197 = vmatpush1.bf16.msra.mxu0 0
    %198 = vmatprep.mubr.bf16.mxu0 0
    %199 = vmatmul.mubr.bf16.gmra.mrb[0].mxu0 %v164
    %v200 = vpop.f32.mrb[0].mxu0
    %v201 = vadd.f32 0.0, %v200
    %v202 = vpop.f32.mrb[0].mxu0
    %v203 = vpop.f32.mrb[0].mxu0
    %v204 = vpop.f32.mrb[0].mxu0
    %205 = vdwg.mxu0
    %v206 = vadd.f32 %v158, %v201
    %v207 = vmul.f32 %v206, 0.5
    %v208 = vtanh.pop %v207
    %v209 = vmul.f32 %v208, 0.5
    %v210 = vadd.f32 %v209, 0.5
    %v211 = vadd.f32 %v201, %v125
    %213 = vrot.lane.b32.xlu0 %v211, 64
    %v214 = vpop.permute.xlu0 %213
    %v216 = vmul.f32 %v210, %v214
    %218 = vrot.lane.b32.xlu0 %v216, 64
    %v219 = vpop.permute.xlu0 %218
    %v221 = vadd.f32 %v158, %v219
    %v222 = vtanh.pop %v221
    %v223 = vsub.f32 1.0, %v210
    %225 = vrot.lane.b32.xlu0 %v222, 96
    %v226 = vpop.permute.xlu0 %225
    %v228 = vmul.f32 %v223, %v226
    %v229 = vmul.f32 %v210, %v150
    %v230 = vadd.f32 %v228, %v229
    %232 = vrot.lane.b32.xlu0 %v230, 96
    %v233 = vpop.permute.xlu0 %232
    %s235 = scalar_lea.vmem [#allocation8], 2
    %236 = vst.msk [vmem:[%s235] sm:$0x3] %vm155, %v233
    %s237 = scalar_lea.vmem [#allocation3], 4
    %v238 = vld [vmem:[%s237] sm:$0x3]
    %v239 = vpack.c.bf16 %v230, %v230
    %241 = vrot.lane.b32.xlu0 %v239, 96
    %v242 = vpop.permute.xlu0 %241
    %v244 = vsel %vm70, %v242, 0
    %246 = vmatprep.subr.bf16.mxu0 0
    %247 = vmatpush1.bf16.msra.mxu0 %v66
    %248 = vmatprep.subr.bf16.mxu0 0
    %249 = vmatpush1.bf16.msra.mxu0 %v67
    %250 = vmatprep.subr.bf16.mxu0 0
    %251 = vmatpush1.bf16.msra.mxu0 0
    %252 = vmatprep.subr.bf16.mxu0 0
    %253 = vmatpush1.bf16.msra.mxu0 0
    %254 = vmatprep.subr.bf16.mxu0 0
    %255 = vmatpush1.bf16.msra.mxu0 0
    %256 = vmatprep.subr.bf16.mxu0 0
    %257 = vmatpush1.bf16.msra.mxu0 0
    %258 = vmatprep.subr.bf16.mxu0 0
    %259 = vmatpush1.bf16.msra.mxu0 0
    %260 = vmatprep.subr.bf16.mxu0 0
    %261 = vmatpush1.bf16.msra.mxu0 0
    %262 = vmatprep.subr.bf16.mxu0 0
    %263 = vmatpush1.bf16.msra.mxu0 0
    %264 = vmatprep.subr.bf16.mxu0 0
    %265 = vmatpush1.bf16.msra.mxu0 0
    %266 = vmatprep.subr.bf16.mxu0 0
    %267 = vmatpush1.bf16.msra.mxu0 0
    %268 = vmatprep.subr.bf16.mxu0 0
    %269 = vmatpush1.bf16.msra.mxu0 0
    %270 = vmatprep.subr.bf16.mxu0 0
    %271 = vmatpush1.bf16.msra.mxu0 0
    %272 = vmatprep.subr.bf16.mxu0 0
    %273 = vmatpush1.bf16.msra.mxu0 0
    %274 = vmatprep.subr.bf16.mxu0 0
    %275 = vmatpush1.bf16.msra.mxu0 0
    %276 = vmatprep.subr.bf16.mxu0 0
    %277 = vmatpush1.bf16.msra.mxu0 0
    %278 = vmatprep.mubr.bf16.mxu0 0
    %279 = vmatmul.mubr.bf16.gmra.mrb[0].mxu0 %v244
    %v280 = vpop.f32.mrb[0].mxu0
    %v281 = vadd.f32 0.0, %v280
    %v282 = vpop.f32.mrb[0].mxu0
    %v283 = vpop.f32.mrb[0].mxu0
    %v284 = vpop.f32.mrb[0].mxu0
    %285 = vdwg.mxu0
    %v286 = vadd.f32 %v238, %v281
    %v287 = vmul.f32 %v286, 0.5
    %v288 = vtanh.pop %v287
    %v289 = vmul.f32 %v288, 0.5
    %v290 = vadd.f32 %v289, 0.5
    %v291 = vadd.f32 %v281, %v125
    %293 = vrot.lane.b32.xlu0 %v291, 64
    %v294 = vpop.permute.xlu0 %293
    %v296 = vmul.f32 %v290, %v294
    %298 = vrot.lane.b32.xlu0 %v296, 64
    %v299 = vpop.permute.xlu0 %298
    %v301 = vadd.f32 %v238, %v299
    %v302 = vtanh.pop %v301
    %v303 = vsub.f32 1.0, %v290
    %305 = vrot.lane.b32.xlu0 %v302, 96
    %v306 = vpop.permute.xlu0 %305
    %v308 = vmul.f32 %v303, %v306
    %v309 = vmul.f32 %v290, %v230
    %v310 = vadd.f32 %v308, %v309
    %312 = vrot.lane.b32.xlu0 %v310, 96
    %v313 = vpop.permute.xlu0 %312
    %s315 = scalar_lea.vmem [#allocation8], 4
    %316 = vst.msk [vmem:[%s315] sm:$0x3] %vm155, %v313
    %s317 = scalar_lea.vmem [#allocation3], 6
    %v318 = vld [vmem:[%s317] sm:$0x3]
    %v319 = vpack.c.bf16 %v310, %v310
    %321 = vrot.lane.b32.xlu0 %v319, 96
    %v322 = vpop.permute.xlu0 %321
    %v324 = vsel %vm70, %v322, 0
    %326 = vmatprep.subr.bf16.mxu0 0
    %327 = vmatpush1.bf16.msra.mxu0 %v66
    %328 = vmatprep.subr.bf16.mxu0 0
    %329 = vmatpush1.bf16.msra.mxu0 %v67
    %330 = vmatprep.subr.bf16.mxu0 0
    %331 = vmatpush1.bf16.msra.mxu0 0
    %332 = vmatprep.subr.bf16.mxu0 0
    %333 = vmatpush1.bf16.msra.mxu0 0
    %334 = vmatprep.subr.bf16.mxu0 0
    %335 = vmatpush1.bf16.msra.mxu0 0
    %336 = vmatprep.subr.bf16.mxu0 0
    %337 = vmatpush1.bf16.msra.mxu0 0
    %338 = vmatprep.subr.bf16.mxu0 0
    %339 = vmatpush1.bf16.msra.mxu0 0
    %340 = vmatprep.subr.bf16.mxu0 0
    %341 = vmatpush1.bf16.msra.mxu0 0
    %342 = vmatprep.subr.bf16.mxu0 0
    %343 = vmatpush1.bf16.msra.mxu0 0
    %344 = vmatprep.subr.bf16.mxu0 0
    %345 = vmatpush1.bf16.msra.mxu0 0
    %346 = vmatprep.subr.bf16.mxu0 0
    %347 = vmatpush1.bf16.msra.mxu0 0
    %348 = vmatprep.subr.bf16.mxu0 0
    %349 = vmatpush1.bf16.msra.mxu0 0
    %350 = vmatprep.subr.bf16.mxu0 0
    %351 = vmatpush1.bf16.msra.mxu0 0
    %352 = vmatprep.subr.bf16.mxu0 0
    %353 = vmatpush1.bf16.msra.mxu0 0
    %354 = vmatprep.subr.bf16.mxu0 0
    %355 = vmatpush1.bf16.msra.mxu0 0
    %356 = vmatprep.subr.bf16.mxu0 0
    %357 = vmatpush1.bf16.msra.mxu0 0
    %358 = vmatprep.mubr.bf16.mxu0 0
    %359 = vmatmul.mubr.bf16.gmra.mrb[0].mxu0 %v324
    %v360 = vpop.f32.mrb[0].mxu0
    %v361 = vadd.f32 0.0, %v360
    %v362 = vpop.f32.mrb[0].mxu0
    %v363 = vpop.f32.mrb[0].mxu0
    %v364 = vpop.f32.mrb[0].mxu0
    %365 = vdwg.mxu0
    %v366 = vadd.f32 %v318, %v361
    %v367 = vmul.f32 %v366, 0.5
    %v368 = vtanh.pop %v367
    %v369 = vmul.f32 %v368, 0.5
    %v370 = vadd.f32 %v369, 0.5
    %v371 = vadd.f32 %v361, %v125
    %373 = vrot.lane.b32.xlu0 %v371, 64
    %v374 = vpop.permute.xlu0 %373
    %v376 = vmul.f32 %v370, %v374
    %378 = vrot.lane.b32.xlu0 %v376, 64
    %v379 = vpop.permute.xlu0 %378
    %v381 = vadd.f32 %v318, %v379
    %v382 = vtanh.pop %v381
    %v383 = vsub.f32 1.0, %v370
    %385 = vrot.lane.b32.xlu0 %v382, 96
    %v386 = vpop.permute.xlu0 %385
    %v388 = vmul.f32 %v383, %v386
    %v389 = vmul.f32 %v370, %v310
    %v390 = vadd.f32 %v388, %v389
    %392 = vrot.lane.b32.xlu0 %v390, 96
    %v393 = vpop.permute.xlu0 %392
    %s395 = scalar_lea.vmem [#allocation8], 6
    %396 = vst.msk [vmem:[%s395] sm:$0x3] %vm155, %v393
    %s397 = scalar_lea.vmem [#allocation3], 8
    %v398 = vld [vmem:[%s397] sm:$0x3]
    %v399 = vpack.c.bf16 %v390, %v390
    %401 = vrot.lane.b32.xlu0 %v399, 96
    %v402 = vpop.permute.xlu0 %401
    %v404 = vsel %vm70, %v402, 0
    %406 = vmatprep.subr.bf16.mxu0 0
    %407 = vmatpush1.bf16.msra.mxu0 %v66
    %408 = vmatprep.subr.bf16.mxu0 0
    %409 = vmatpush1.bf16.msra.mxu0 %v67
    %410 = vmatprep.subr.bf16.mxu0 0
    %411 = vmatpush1.bf16.msra.mxu0 0
    %412 = vmatprep.subr.bf16.mxu0 0
    %413 = vmatpush1.bf16.msra.mxu0 0
    %414 = vmatprep.subr.bf16.mxu0 0
    %415 = vmatpush1.bf16.msra.mxu0 0
    %416 = vmatprep.subr.bf16.mxu0 0
    %417 = vmatpush1.bf16.msra.mxu0 0
    %418 = vmatprep.subr.bf16.mxu0 0
    %419 = vmatpush1.bf16.msra.mxu0 0
    %420 = vmatprep.subr.bf16.mxu0 0
    %421 = vmatpush1.bf16.msra.mxu0 0
    %422 = vmatprep.subr.bf16.mxu0 0
    %423 = vmatpush1.bf16.msra.mxu0 0
    %424 = vmatprep.subr.bf16.mxu0 0
    %425 = vmatpush1.bf16.msra.mxu0 0
    %426 = vmatprep.subr.bf16.mxu0 0
    %427 = vmatpush1.bf16.msra.mxu0 0
    %428 = vmatprep.subr.bf16.mxu0 0
    %429 = vmatpush1.bf16.msra.mxu0 0
    %430 = vmatprep.subr.bf16.mxu0 0
    %431 = vmatpush1.bf16.msra.mxu0 0
    %432 = vmatprep.subr.bf16.mxu0 0
    %433 = vmatpush1.bf16.msra.mxu0 0
    %434 = vmatprep.subr.bf16.mxu0 0
    %435 = vmatpush1.bf16.msra.mxu0 0
    %436 = vmatprep.subr.bf16.mxu0 0
    %437 = vmatpush1.bf16.msra.mxu0 0
    %438 = vmatprep.mubr.bf16.mxu0 0
    %439 = vmatmul.mubr.bf16.gmra.mrb[0].mxu0 %v404
    %v440 = vpop.f32.mrb[0].mxu0
    %v441 = vadd.f32 0.0, %v440
    %v442 = vpop.f32.mrb[0].mxu0
    %v443 = vpop.f32.mrb[0].mxu0
    %v444 = vpop.f32.mrb[0].mxu0
    %445 = vdwg.mxu0
    %v446 = vadd.f32 %v398, %v441
    %v447 = vmul.f32 %v446, 0.5
    %v448 = vtanh.pop %v447
    %v449 = vmul.f32 %v448, 0.5
    %v450 = vadd.f32 %v449, 0.5
    %v451 = vadd.f32 %v441, %v125
    %453 = vrot.lane.b32.xlu0 %v451, 64
    %v454 = vpop.permute.xlu0 %453
    %v456 = vmul.f32 %v450, %v454
    %458 = vrot.lane.b32.xlu0 %v456, 64
    %v459 = vpop.permute.xlu0 %458
    %v461 = vadd.f32 %v398, %v459
    %v462 = vtanh.pop %v461
    %v463 = vsub.f32 1.0, %v450
    %465 = vrot.lane.b32.xlu0 %v462, 96
    %v466 = vpop.permute.xlu0 %465
    %v468 = vmul.f32 %v463, %v466
    %v469 = vmul.f32 %v450, %v390
    %v470 = vadd.f32 %v468, %v469
    %472 = vrot.lane.b32.xlu0 %v470, 96
    %v473 = vpop.permute.xlu0 %472
    %s475 = scalar_lea.vmem [#allocation8], 8
    %476 = vst.msk [vmem:[%s475] sm:$0x3] %vm155, %v473
    %s477 = scalar_lea.vmem [#allocation3], 10
    %v478 = vld [vmem:[%s477] sm:$0x3]
    %v479 = vpack.c.bf16 %v470, %v470
    %481 = vrot.lane.b32.xlu0 %v479, 96
    %v482 = vpop.permute.xlu0 %481
    %v484 = vsel %vm70, %v482, 0
    %486 = vmatprep.subr.bf16.mxu0 0
    %487 = vmatpush1.bf16.msra.mxu0 %v66
    %488 = vmatprep.subr.bf16.mxu0 0
    %489 = vmatpush1.bf16.msra.mxu0 %v67
    %490 = vmatprep.subr.bf16.mxu0 0
    %491 = vmatpush1.bf16.msra.mxu0 0
    %492 = vmatprep.subr.bf16.mxu0 0
    %493 = vmatpush1.bf16.msra.mxu0 0
    %494 = vmatprep.subr.bf16.mxu0 0
    %495 = vmatpush1.bf16.msra.mxu0 0
    %496 = vmatprep.subr.bf16.mxu0 0
    %497 = vmatpush1.bf16.msra.mxu0 0
    %498 = vmatprep.subr.bf16.mxu0 0
    %499 = vmatpush1.bf16.msra.mxu0 0
    %500 = vmatprep.subr.bf16.mxu0 0
    %501 = vmatpush1.bf16.msra.mxu0 0
    %502 = vmatprep.subr.bf16.mxu0 0
    %503 = vmatpush1.bf16.msra.mxu0 0
    %504 = vmatprep.subr.bf16.mxu0 0
    %505 = vmatpush1.bf16.msra.mxu0 0
    %506 = vmatprep.subr.bf16.mxu0 0
    %507 = vmatpush1.bf16.msra.mxu0 0
    %508 = vmatprep.subr.bf16.mxu0 0
    %509 = vmatpush1.bf16.msra.mxu0 0
    %510 = vmatprep.subr.bf16.mxu0 0
    %511 = vmatpush1.bf16.msra.mxu0 0
    %512 = vmatprep.subr.bf16.mxu0 0
    %513 = vmatpush1.bf16.msra.mxu0 0
    %514 = vmatprep.subr.bf16.mxu0 0
    %515 = vmatpush1.bf16.msra.mxu0 0
    %516 = vmatprep.subr.bf16.mxu0 0
    %517 = vmatpush1.bf16.msra.mxu0 0
    %518 = vmatprep.mubr.bf16.mxu0 0
    %519 = vmatmul.mubr.bf16.gmra.mrb[0].mxu0 %v484
    %v520 = vpop.f32.mrb[0].mxu0
    %v521 = vadd.f32 0.0, %v520
    %v522 = vpop.f32.mrb[0].mxu0
    %v523 = vpop.f32.mrb[0].mxu0
    %v524 = vpop.f32.mrb[0].mxu0
    %525 = vdwg.mxu0
    %v526 = vadd.f32 %v478, %v521
    %v527 = vmul.f32 %v526, 0.5
    %v528 = vtanh.pop %v527
    %v529 = vmul.f32 %v528, 0.5
    %v530 = vadd.f32 %v529, 0.5
    %v531 = vadd.f32 %v521, %v125
    %533 = vrot.lane.b32.xlu0 %v531, 64
    %v534 = vpop.permute.xlu0 %533
    %v536 = vmul.f32 %v530, %v534
    %538 = vrot.lane.b32.xlu0 %v536, 64
    %v539 = vpop.permute.xlu0 %538
    %v541 = vadd.f32 %v478, %v539
    %v542 = vtanh.pop %v541
    %v543 = vsub.f32 1.0, %v530
    %545 = vrot.lane.b32.xlu0 %v542, 96
    %v546 = vpop.permute.xlu0 %545
    %v548 = vmul.f32 %v543, %v546
    %v549 = vmul.f32 %v530, %v470
    %v550 = vadd.f32 %v548, %v549
    %552 = vrot.lane.b32.xlu0 %v550, 96
    %v553 = vpop.permute.xlu0 %552
    %s555 = scalar_lea.vmem [#allocation8], 10
    %556 = vst.msk [vmem:[%s555] sm:$0x3] %vm155, %v553
    %s557 = scalar_lea.vmem [#allocation3], 12
    %v558 = vld [vmem:[%s557] sm:$0x3]
    %v559 = vpack.c.bf16 %v550, %v550
    %561 = vrot.lane.b32.xlu0 %v559, 96
    %v562 = vpop.permute.xlu0 %561
    %v564 = vsel %vm70, %v562, 0
    %566 = vmatprep.subr.bf16.mxu0 0
    %567 = vmatpush1.bf16.msra.mxu0 %v66
    %568 = vmatprep.subr.bf16.mxu0 0
    %569 = vmatpush1.bf16.msra.mxu0 %v67
    %570 = vmatprep.subr.bf16.mxu0 0
    %571 = vmatpush1.bf16.msra.mxu0 0
    %572 = vmatprep.subr.bf16.mxu0 0
    %573 = vmatpush1.bf16.msra.mxu0 0
    %574 = vmatprep.subr.bf16.mxu0 0
    %575 = vmatpush1.bf16.msra.mxu0 0
    %576 = vmatprep.subr.bf16.mxu0 0
    %577 = vmatpush1.bf16.msra.mxu0 0
    %578 = vmatprep.subr.bf16.mxu0 0
    %579 = vmatpush1.bf16.msra.mxu0 0
    %580 = vmatprep.subr.bf16.mxu0 0
    %581 = vmatpush1.bf16.msra.mxu0 0
    %582 = vmatprep.subr.bf16.mxu0 0
    %583 = vmatpush1.bf16.msra.mxu0 0
    %584 = vmatprep.subr.bf16.mxu0 0
    %585 = vmatpush1.bf16.msra.mxu0 0
    %586 = vmatprep.subr.bf16.mxu0 0
    %587 = vmatpush1.bf16.msra.mxu0 0
    %588 = vmatprep.subr.bf16.mxu0 0
    %589 = vmatpush1.bf16.msra.mxu0 0
    %590 = vmatprep.subr.bf16.mxu0 0
    %591 = vmatpush1.bf16.msra.mxu0 0
    %592 = vmatprep.subr.bf16.mxu0 0
    %593 = vmatpush1.bf16.msra.mxu0 0
    %594 = vmatprep.subr.bf16.mxu0 0
    %595 = vmatpush1.bf16.msra.mxu0 0
    %596 = vmatprep.subr.bf16.mxu0 0
    %597 = vmatpush1.bf16.msra.mxu0 0
    %598 = vmatprep.mubr.bf16.mxu0 0
    %599 = vmatmul.mubr.bf16.gmra.mrb[0].mxu0 %v564
    %v600 = vpop.f32.mrb[0].mxu0
    %v601 = vadd.f32 0.0, %v600
    %v602 = vpop.f32.mrb[0].mxu0
    %v603 = vpop.f32.mrb[0].mxu0
    %v604 = vpop.f32.mrb[0].mxu0
    %605 = vdwg.mxu0
    %v606 = vadd.f32 %v558, %v601
    %v607 = vmul.f32 %v606, 0.5
    %v608 = vtanh.pop %v607
    %v609 = vmul.f32 %v608, 0.5
    %v610 = vadd.f32 %v609, 0.5
    %v611 = vadd.f32 %v601, %v125
    %613 = vrot.lane.b32.xlu0 %v611, 64
    %v614 = vpop.permute.xlu0 %613
    %v616 = vmul.f32 %v610, %v614
    %618 = vrot.lane.b32.xlu0 %v616, 64
    %v619 = vpop.permute.xlu0 %618
    %v621 = vadd.f32 %v558, %v619
    %v622 = vtanh.pop %v621
    %v623 = vsub.f32 1.0, %v610
    %625 = vrot.lane.b32.xlu0 %v622, 96
    %v626 = vpop.permute.xlu0 %625
    %v628 = vmul.f32 %v623, %v626
    %v629 = vmul.f32 %v610, %v550
    %v630 = vadd.f32 %v628, %v629
    %632 = vrot.lane.b32.xlu0 %v630, 96
    %v633 = vpop.permute.xlu0 %632
    %s635 = scalar_lea.vmem [#allocation8], 12
    %636 = vst.msk [vmem:[%s635] sm:$0x3] %vm155, %v633
    %s637 = scalar_lea.vmem [#allocation3], 14
    %v638 = vld [vmem:[%s637] sm:$0x3]
    %v639 = vpack.c.bf16 %v630, %v630
    %641 = vrot.lane.b32.xlu0 %v639, 96
    %v642 = vpop.permute.xlu0 %641
    %v644 = vsel %vm70, %v642, 0
    %646 = vmatprep.subr.bf16.mxu0 0
    %647 = vmatpush1.bf16.msra.mxu0 %v66
    %648 = vmatprep.subr.bf16.mxu0 0
    %649 = vmatpush1.bf16.msra.mxu0 %v67
    %650 = vmatprep.subr.bf16.mxu0 0
    %651 = vmatpush1.bf16.msra.mxu0 0
    %652 = vmatprep.subr.bf16.mxu0 0
    %653 = vmatpush1.bf16.msra.mxu0 0
    %654 = vmatprep.subr.bf16.mxu0 0
    %655 = vmatpush1.bf16.msra.mxu0 0
    %656 = vmatprep.subr.bf16.mxu0 0
    %657 = vmatpush1.bf16.msra.mxu0 0
    %658 = vmatprep.subr.bf16.mxu0 0
    %659 = vmatpush1.bf16.msra.mxu0 0
    %660 = vmatprep.subr.bf16.mxu0 0
    %661 = vmatpush1.bf16.msra.mxu0 0
    %662 = vmatprep.subr.bf16.mxu0 0
    %663 = vmatpush1.bf16.msra.mxu0 0
    %664 = vmatprep.subr.bf16.mxu0 0
    %665 = vmatpush1.bf16.msra.mxu0 0
    %666 = vmatprep.subr.bf16.mxu0 0
    %667 = vmatpush1.bf16.msra.mxu0 0
    %668 = vmatprep.subr.bf16.mxu0 0
    %669 = vmatpush1.bf16.msra.mxu0 0
    %670 = vmatprep.subr.bf16.mxu0 0
    %671 = vmatpush1.bf16.msra.mxu0 0
    %672 = vmatprep.subr.bf16.mxu0 0
    %673 = vmatpush1.bf16.msra.mxu0 0
    %674 = vmatprep.subr.bf16.mxu0 0
    %675 = vmatpush1.bf16.msra.mxu0 0
    %676 = vmatprep.subr.bf16.mxu0 0
    %677 = vmatpush1.bf16.msra.mxu0 0
    %678 = vmatprep.mubr.bf16.mxu0 0
    %679 = vmatmul.mubr.bf16.gmra.mrb[0].mxu0 %v644
    %v680 = vpop.f32.mrb[0].mxu0
    %v681 = vadd.f32 0.0, %v680
    %v682 = vpop.f32.mrb[0].mxu0
    %v683 = vpop.f32.mrb[0].mxu0
    %v684 = vpop.f32.mrb[0].mxu0
    %685 = vdwg.mxu0
    %v686 = vadd.f32 %v638, %v681
    %v687 = vmul.f32 %v686, 0.5
    %v688 = vtanh.pop %v687
    %v689 = vmul.f32 %v688, 0.5
    %v690 = vadd.f32 %v689, 0.5
    %v691 = vadd.f32 %v681, %v125
    %693 = vrot.lane.b32.xlu0 %v691, 64
    %v694 = vpop.permute.xlu0 %693
    %v696 = vmul.f32 %v690, %v694
    %698 = vrot.lane.b32.xlu0 %v696, 64
    %v699 = vpop.permute.xlu0 %698
    %v701 = vadd.f32 %v638, %v699
    %v702 = vtanh.pop %v701
    %v703 = vsub.f32 1.0, %v690
    %705 = vrot.lane.b32.xlu0 %v702, 96
    %v706 = vpop.permute.xlu0 %705
    %v708 = vmul.f32 %v703, %v706
    %v709 = vmul.f32 %v690, %v630
    %v710 = vadd.f32 %v708, %v709
    %712 = vrot.lane.b32.xlu0 %v710, 96
    %v713 = vpop.permute.xlu0 %712
    %s715 = scalar_lea.vmem [#allocation8], 14
    %716 = vst.msk [vmem:[%s715] sm:$0x3] %vm155, %v713
    %717 = vst.msk [vmem:[#allocation2] sm:$0x3] %vm155, %v713
    // Predicated region
    $region26: #{tpu_custom_call.1} parent=1 // pred_check
      _
    $region27: #{tpu_custom_call.1} parent=1 // pred_check_branch
      %719 = sbr.rel (0) target = $region29
    $region28: #{tpu_custom_call.1} parent=1 // pred_region
      %s721 = ssub.s32 256, 256
      %722 = vsyncadd [#allocation5], %s721
      %s723 = sshll.u32 [#allocation8], 4
      %s724 = int_to_ptr.vmem [resolvable:$true] %s723
      %729 = dma.vmem_to_hbm [thread:$0]  %s724, 256, %s3, [#allocation5], 32, 32, 2
    $region29: #{tpu_custom_call.1} parent=1 // pred_fallthru
      _
    // Predicated region
    $region30: #{tpu_custom_call.1} parent=1 // pred_check
      _
    $region31: #{tpu_custom_call.1} parent=1 // pred_check_branch
      %731 = sbr.rel (0) target = $region33
    $region32: #{tpu_custom_call.1} parent=1 // pred_region
      %732 = dma.done [#allocation5], 256
    $region33: #{tpu_custom_call.1} parent=1 // pred_fallthru
      _
    %733 = vsyncpa [#allocation4], 1
    %734 = vsyncpa [#allocation7], 1
    %735 = vsyncpa [#allocation5], 1

</llo_original>
